<compile_context>
chip_gen: v5e
topology: v5e:2x2
jax: 0.10.0
libtpu: 0.0.40
codegen_flags: <defaults>
</compile_context>

<pallas_src>
import functools

import jax
import jax.numpy as jnp
from jax.experimental import pallas as pl
from jax.experimental.pallas import tpu as pltpu


def _mlp_kernel(x_ref, w1_ref, vec_ref, w2_ref, o_ref,
                *, apply_bn: bool, negative_slope: float, eps: float,
                hidden: int, d_out: int):
    x = x_ref[...]                     # (B, D_in)  f32
    w1 = w1_ref[...]                   # (D_in, H)  f32
    w2 = w2_ref[...]                   # (H, D_out) f32
    vec = vec_ref[...]                 # (k, max(H, D_out)) packed per-feature vectors

    # fc1 (bias folded out when BN is applied: mean subtraction cancels it)
    h = jnp.dot(x, w1, preferred_element_type=jnp.float32)       # (B, H)

    if apply_bn:
        gamma = vec[0:1, :hidden]
        beta = vec[1:2, :hidden]
        b2 = vec[2:3, :d_out]
        # BatchNorm1d training mode: batch mean / biased variance, folded into
        # a single per-feature scale/shift.
        inv_b = 1.0 / h.shape[0]
        s1 = jnp.sum(h, axis=0, keepdims=True)
        s2 = jnp.sum(h * h, axis=0, keepdims=True)
        mean = s1 * inv_b
        var = s2 * inv_b - mean * mean
        scale = gamma * jax.lax.rsqrt(var + eps)
        shift = beta - mean * scale
        h = h * scale + shift
    else:
        b1 = vec[0:1, :hidden]
        b2 = vec[1:2, :d_out]
        h = h + b1

    # LeakyReLU(0.3): max(h, slope*h) is exact for 0 < slope < 1.
    h = jnp.maximum(h, negative_slope * h)

    # fc2 -> true (B, D_out) output, stored directly (no padded slab).
    out = jnp.dot(h, w2, preferred_element_type=jnp.float32) + b2
    o_ref[...] = out.astype(o_ref.dtype)


def prepare_params(w1, b1, gamma, beta, w2, b2):
    """One-time packing of parameters (hoisted out of the per-call path).

    Weights use (in_features, out_features) layout; biases/BN params are (1, F).
    """
    H = w1.shape[1]
    D_out = w2.shape[1]
    W = max(H, D_out)

    def row(a):
        a = a.reshape(1, -1).astype(jnp.float32)
        return jnp.pad(a, ((0, 0), (0, W - a.shape[1])))

    # Variant used when BatchNorm runs (B > 1): fc1 bias cancels, skip its DMA.
    vec_bn = jnp.concatenate([row(gamma), row(beta), row(b2)], axis=0)    # (3, W)
    # Variant used when BatchNorm is skipped (B == 1): gamma/beta are dead.
    vec_nobn = jnp.concatenate([row(b1), row(b2)], axis=0)                # (2, W)

    return {
        "w1": jnp.asarray(w1, jnp.float32),
        "w2": jnp.asarray(w2, jnp.float32),
        "vec_bn": vec_bn,
        "vec_nobn": vec_nobn,
    }


def var_bs_mlp(x, params, *, negative_slope=0.3, eps=1e-5):
    """Forward pass matching Var_BS_MLP.forward (training-mode BatchNorm1d)."""
    B, D_in = x.shape
    w1 = params["w1"]
    w2 = params["w2"]
    H = w1.shape[1]
    D_out = w2.shape[1]
    apply_bn = (B != 1)  # static (shape-dependent), same as the PyTorch guard
    vec = params["vec_bn"] if apply_bn else params["vec_nobn"]

    kernel = functools.partial(_mlp_kernel, apply_bn=apply_bn,
                               negative_slope=negative_slope, eps=eps,
                               hidden=H, d_out=D_out)

    full = lambda shape: pl.BlockSpec(shape, lambda: tuple(0 for _ in shape))

    flops = 2 * B * D_in * H + 2 * B * H * D_out + (8 * B * H if apply_bn else 2 * B * H)
    bytes_accessed = 4 * (x.size + w1.size + vec.size + w2.size + B * D_out)
    cost = pl.CostEstimate(flops=flops,
                           transcendentals=H if apply_bn else 0,
                           bytes_accessed=bytes_accessed)

    return pl.pallas_call(
        kernel,
        out_shape=jax.ShapeDtypeStruct((B, D_out), x.dtype),
        grid_spec=pltpu.PrefetchScalarGridSpec(
            num_scalar_prefetch=0,
            grid=(),
            in_specs=[full(x.shape), full(w1.shape),
                      full(vec.shape), full(w2.shape)],
            out_specs=full((B, D_out)),
        ),
        cost_estimate=cost,
    )(x, w1, vec, w2)


def _init_linear(key, fan_in, fan_out):
    # Mirrors PyTorch nn.Linear default init: U(-1/sqrt(fan_in), 1/sqrt(fan_in))
    kw, kb = jax.random.split(key)
    bound = 1.0 / (fan_in ** 0.5)
    w = jax.random.uniform(kw, (fan_in, fan_out), jnp.float32, -bound, bound)
    b = jax.random.uniform(kb, (1, fan_out), jnp.float32, -bound, bound)
    return w, b


def _reference(x, w1, b1, gamma, beta, w2, b2, *, slope=0.3, eps=1e-5):
    h = x @ w1 + b1
    if x.shape[0] != 1:
        m = h.mean(0, keepdims=True)
        v = ((h - m) ** 2).mean(0, keepdims=True)
        h = (h - m) / jnp.sqrt(v + eps) * gamma + beta
    h = jnp.where(h > 0, h, slope * h)
    return h @ w2 + b2


if __name__ == "__main__":
    input_size, hidden_size, output_size = 16, 32, 8
    batch = 8  # > 1 so the BatchNorm branch is exercised

    key = jax.random.PRNGKey(0)
    kx, k1, k2 = jax.random.split(key, 3)

    x = jax.random.normal(kx, (batch, input_size), jnp.float32)
    w1, b1 = _init_linear(k1, input_size, hidden_size)
    w2, b2 = _init_linear(k2, hidden_size, output_size)
    gamma = jnp.ones((1, hidden_size), jnp.float32)   # BatchNorm1d weight init
    beta = jnp.zeros((1, hidden_size), jnp.float32)   # BatchNorm1d bias init

    # One-time parameter packing (hot path is just pallas_call).
    params = jax.block_until_ready(prepare_params(w1, b1, gamma, beta, w2, b2))

    # Batch > 1 path (BatchNorm applied, fc1 bias folded away).
    out = var_bs_mlp(x, params)
    jax.block_until_ready(out)
    ref = _reference(x, w1, b1, gamma, beta, w2, b2)
    assert out.shape == (batch, output_size)
    assert jnp.allclose(out, ref, atol=1e-4, rtol=1e-4), "mismatch (B>1 path)"

    # Batch == 1 path (BatchNorm skipped, fc1 bias kept, gamma/beta not DMA'd).
    x1 = x[:1]
    out1 = var_bs_mlp(x1, params)
    jax.block_until_ready(out1)
    ref1 = _reference(x1, w1, b1, gamma, beta, w2, b2)
    assert out1.shape == (1, output_size)
    assert jnp.allclose(out1, ref1, atol=1e-4, rtol=1e-4), "mismatch (B==1 path)"

    print("KERNEL_OK")
</pallas_src>

<mosaic_0001>
module attributes {stable_mosaic.version = 11 : i64} {
  func.func @_mlp_kernel(%arg0: memref<8x16xf32, #tpu.memory_space<vmem>>, %arg1: memref<16x32xf32, #tpu.memory_space<vmem>>, %arg2: memref<3x32xf32, #tpu.memory_space<vmem>>, %arg3: memref<32x8xf32, #tpu.memory_space<vmem>>, %arg4: memref<8x8xf32, #tpu.memory_space<vmem>>) attributes {dimension_semantics = [], scalar_prefetch = 0 : i64, scratch_operands = 0 : i64, tpu.core_type = #tpu.core_type<tc>} {
    %c0 = arith.constant 0 : index
    %c0_0 = arith.constant 0 : index
    %0 = vector.load %arg0[%c0, %c0_0] : memref<8x16xf32, #tpu.memory_space<vmem>>, vector<8x16xf32>
    %c0_1 = arith.constant 0 : index
    %c0_2 = arith.constant 0 : index
    %1 = vector.load %arg1[%c0_1, %c0_2] : memref<16x32xf32, #tpu.memory_space<vmem>>, vector<16x32xf32>
    %c0_3 = arith.constant 0 : index
    %c0_4 = arith.constant 0 : index
    %2 = vector.load %arg3[%c0_3, %c0_4] : memref<32x8xf32, #tpu.memory_space<vmem>>, vector<32x8xf32>
    %c0_5 = arith.constant 0 : index
    %c0_6 = arith.constant 0 : index
    %3 = vector.load %arg2[%c0_5, %c0_6] : memref<3x32xf32, #tpu.memory_space<vmem>>, vector<3x32xf32>
    %cst = arith.constant dense<0.000000e+00> : vector<8x32xf32>
    %4 = tpu.matmul %0, %1, %cst {dimension_numbers = #tpu.dot_dimension_numbers<[1], [0], [0], [1], [0, 0, 1, 1], [], []>} : vector<8x16xf32>, vector<16x32xf32>, vector<8x32xf32> -> vector<8x32xf32>
    %5 = vector.extract_strided_slice %3 {offsets = [0, 0], sizes = [1, 32], strides = [1, 1]} : vector<3x32xf32> to vector<1x32xf32>
    %6 = vector.extract_strided_slice %3 {offsets = [1, 0], sizes = [1, 32], strides = [1, 1]} : vector<3x32xf32> to vector<1x32xf32>
    %7 = vector.extract_strided_slice %3 {offsets = [2, 0], sizes = [1, 8], strides = [1, 1]} : vector<3x32xf32> to vector<1x8xf32>
    %cst_7 = arith.constant dense<0.000000e+00> : vector<32xf32>
    %8 = vector.multi_reduction <add>, %4, %cst_7 [0] : vector<8x32xf32> to vector<32xf32>
    %9 = vector.shape_cast %8 : vector<32xf32> to vector<1x32xf32>
    %10 = arith.mulf %4, %4 : vector<8x32xf32>
    %cst_8 = arith.constant dense<0.000000e+00> : vector<32xf32>
    %11 = vector.multi_reduction <add>, %10, %cst_8 [0] : vector<8x32xf32> to vector<32xf32>
    %12 = vector.shape_cast %11 : vector<32xf32> to vector<1x32xf32>
    %cst_9 = arith.constant 1.250000e-01 : f32
    %13 = vector.broadcast %cst_9 : f32 to vector<1x32xf32>
    %14 = arith.mulf %9, %13 : vector<1x32xf32>
    %cst_10 = arith.constant 1.250000e-01 : f32
    %15 = vector.broadcast %cst_10 : f32 to vector<1x32xf32>
    %16 = arith.mulf %12, %15 : vector<1x32xf32>
    %17 = arith.mulf %14, %14 : vector<1x32xf32>
    %18 = arith.subf %16, %17 : vector<1x32xf32>
    %cst_11 = arith.constant 9.99999974E-6 : f32
    %19 = vector.broadcast %cst_11 : f32 to vector<1x32xf32>
    %20 = arith.addf %18, %19 : vector<1x32xf32>
    %21 = math.rsqrt %20 : vector<1x32xf32>
    %22 = arith.mulf %5, %21 : vector<1x32xf32>
    %23 = arith.mulf %14, %22 : vector<1x32xf32>
    %24 = arith.subf %6, %23 : vector<1x32xf32>
    %25 = vector.broadcast %22 : vector<1x32xf32> to vector<8x32xf32>
    %26 = arith.mulf %4, %25 : vector<8x32xf32>
    %27 = vector.broadcast %24 : vector<1x32xf32> to vector<8x32xf32>
    %28 = arith.addf %26, %27 : vector<8x32xf32>
    %cst_12 = arith.constant 3.000000e-01 : f32
    %29 = vector.broadcast %cst_12 : f32 to vector<8x32xf32>
    %30 = arith.mulf %29, %28 : vector<8x32xf32>
    %31 = arith.maximumf %28, %30 : vector<8x32xf32>
    %cst_13 = arith.constant dense<0.000000e+00> : vector<8x8xf32>
    %32 = tpu.matmul %31, %2, %cst_13 {dimension_numbers = #tpu.dot_dimension_numbers<[1], [0], [0], [1], [0, 0, 1, 1], [], []>} : vector<8x32xf32>, vector<32x8xf32>, vector<8x8xf32> -> vector<8x8xf32>
    %33 = vector.broadcast %7 : vector<1x8xf32> to vector<8x8xf32>
    %34 = arith.addf %32, %33 : vector<8x8xf32>
    %c0_14 = arith.constant 0 : index
    %c0_15 = arith.constant 0 : index
    %35 = vector.load %arg4[%c0_14, %c0_15] : memref<8x8xf32, #tpu.memory_space<vmem>>, vector<8x8xf32>
    tpu.vector_store %arg4[%c0_14, %c0_15], %34 {strides = array<i32>} : memref<8x8xf32, #tpu.memory_space<vmem>>, vector<8x8xf32>,
    return
  }
}

</mosaic_0001>

<llo_original>
// kernel: tpu_custom_call.1
$region0: #{tpu_custom_call.1}
  #allocation0 [shape = 'u32[]', space=smem, size = 0x4, offset = 0x4, fixed_abs, tag = 'smem constant byte address 0x4 - core index']
  #allocation1 [shape = 'u32[72,128]{1,0:T(1,128)}', space=vmem, size = 0x9000, scoped, tag = 'internal scratch']
  %s0 = inlined_call_operand.vmem [shape: f32[8,16], index: 0, kind: input, shape index: {}]
  %s1 = inlined_call_operand.vmem [shape: f32[16,32], index: 1, kind: input, shape index: {}]
  %s2 = inlined_call_operand.vmem [shape: f32[3,32], index: 2, kind: input, shape index: {}]
  %s3 = inlined_call_operand.vmem [shape: f32[32,8], index: 3, kind: input, shape index: {}]
  %s4 = inlined_call_operand.hbm [shape: f32[8,8], index: 4, kind: output, shape index: {}]
  %s5 = sld [smem:[#allocation0]]
  $region26: #{tpu_custom_call.1} parent=0
    _
  %s7 = ssub.s32 1, %s5
  %s8 = scalar_select 0, %s7, %s5
  $region1: #{tpu_custom_call.1} parent=0
    #allocation2 [shape = 'u8[4096]{0}', space=vmem, size = 0x1000, scoped, tag = 'output window, operand 0, single buffered']
    #allocation3 [shape = 's32[1]{0}', space=sflag, size = 0x4, scoped, tag = 'scoped memory for tpu_custom_call.1']
    %9 = vsyncpa [#allocation3], 0
    // Predicated region
    $region2: #{tpu_custom_call.1} parent=1 // pred_check
      _
    $region3: #{tpu_custom_call.1} parent=1 // pred_check_branch
      %11 = sbr.rel (0) target = $region5
    $region4: #{tpu_custom_call.1} parent=1 // pred_region
      _
    $region5: #{tpu_custom_call.1} parent=1 // pred_fallthru
      _
    // Predicated region
    $region6: #{tpu_custom_call.1} parent=1 // pred_check
      _
    $region7: #{tpu_custom_call.1} parent=1 // pred_check_branch
      %13 = sbr.rel (0) target = $region9
    $region8: #{tpu_custom_call.1} parent=1 // pred_region
      _
    $region9: #{tpu_custom_call.1} parent=1 // pred_fallthru
      _
    // Predicated region
    $region10: #{tpu_custom_call.1} parent=1 // pred_check
      _
    $region11: #{tpu_custom_call.1} parent=1 // pred_check_branch
      %15 = sbr.rel (0) target = $region13
    $region12: #{tpu_custom_call.1} parent=1 // pred_region
      _
    $region13: #{tpu_custom_call.1} parent=1 // pred_fallthru
      _
    // Predicated region
    $region14: #{tpu_custom_call.1} parent=1 // pred_check
      _
    $region15: #{tpu_custom_call.1} parent=1 // pred_check_branch
      %17 = sbr.rel (0) target = $region17
    $region16: #{tpu_custom_call.1} parent=1 // pred_region
      _
    $region17: #{tpu_custom_call.1} parent=1 // pred_fallthru
      _
    %v18 = vld [vmem:[%s0] sm:$0xff]
    %v19 = vld [vmem:[%s1] sm:$0xff]
    %v20 = vld [vmem:[%s1 + $0x8] sm:$0xff]
    %v21 = vld [vmem:[%s3] sm:$0xff]
    %v22 = vld [vmem:[%s3 + $0x8] sm:$0xff]
    %v23 = vld [vmem:[%s3 + $0x10] sm:$0xff]
    %v24 = vld [vmem:[%s3 + $0x18] sm:$0xff]
    %v25 = vld [vmem:[%s2] sm:$0x7]
    %vm26 = vcmask 130048
    %v28 = vsel %vm26, %v18, 0
    %30 = vmatpush.msra.mxu0 0.0
    %31 = vmatpush.msra.mxu0 0.0
    %32 = vmatpush.msra.mxu0 0.0
    %33 = vmatpush.msra.mxu0 0.0
    %34 = vmatpush.msra.mxu0 0.0
    %35 = vmatpush.msra.mxu0 0.0
    %36 = vmatpush.msra.mxu0 0.0
    %37 = vmatpush.msra.mxu0 0.0
    %38 = vmatpush.msra.mxu0 0.0
    %39 = vmatpush.msra.mxu0 0.0
    %40 = vmatpush.msra.mxu0 0.0
    %41 = vmatpush.msra.mxu0 0.0
    %42 = vmatpush.msra.mxu0 0.0
    %43 = vmatpush.msra.mxu0 0.0
    %44 = vmatpush.msra.mxu0 %v20
    %45 = vmatpush.msra.mxu0 %v19
    %46 = vmatmul.f32.gmra.mxu0 %v28
    %v47 = vpop.f32.mrf.mxu0
    %v48 = vadd.f32 0.0, %v47
    %49 = vdwg.mxu0
    %vm50 = vcmask 261120
    %v51 = vsel %vm50, %v48, 0.0
    %v52 = vrot.slane %v51, 4
    %v53 = vadd.f32 %v51, %v52
    %v54 = vrot.slane %v53, 2
    %v55 = vadd.f32 %v53, %v54
    %v56 = vrot.slane %v55, 1
    %v57 = vadd.f32 %v55, %v56
    %v58 = vmul.f32 %v48, %v48
    %v59 = vsel %vm50, %v58, 0.0
    %v60 = vrot.slane %v59, 4
    %v61 = vadd.f32 %v59, %v60
    %v62 = vrot.slane %v61, 2
    %v63 = vadd.f32 %v61, %v62
    %v64 = vrot.slane %v63, 1
    %v65 = vadd.f32 %v63, %v64
    %v66 = vmul.f32 %v57, 0.125
    %v67 = vmul.f32 %v65, 0.125
    %v68 = vmul.f32 %v66, %v66
    %v69 = vsub.f32 %v67, %v68
    %v70 = vadd.f32 %v69, 1e-05
    %v71 = vrsqrt.pop %v70
    %v72 = vmul.f32 %v71, %v70
    %v73 = vmul.f32 %v72, %v71
    %v74 = vmul.f32 0.5, %v73
    %v75 = vsub.f32 1.5, %v74
    %v76 = vmul.f32 %v71, %v75
    %vm77 = vweird.f32 %v70
    %vm78 = vweird.f32 %v71
    %vm79 = vmor %vm77, %vm78
    %v80 = vsel %vm79, %v71, %v76
    %v81 = vmul.f32 %v25, %v80
    %v82 = vmul.f32 %v66, %v81
    %v84 = vrot.slane %v82, 7
    %v86 = vsub.f32 %v25, %v84
    %v87 = vperm.slane %v81, 0
    %v88 = vmul.f32 %v48, %v87
    %v89 = vperm.slane %v86, 1
    %v90 = vadd.f32 %v88, %v89
    %v91 = vmul.f32 %v90, 0.3
    %v92 = vmax.f32 %v90, %v91
    %v93 = vperm.slane %v25, 2
    %v95 = vsel %vm50, %v92, 0
    %97 = vmatpush.msra.mxu0 0.0
    %98 = vmatpush.msra.mxu0 0.0
    %99 = vmatpush.msra.mxu0 0.0
    %100 = vmatpush.msra.mxu0 0.0
    %101 = vmatpush.msra.mxu0 0.0
    %102 = vmatpush.msra.mxu0 0.0
    %103 = vmatpush.msra.mxu0 0.0
    %104 = vmatpush.msra.mxu0 0.0
    %105 = vmatpush.msra.mxu0 0.0
    %106 = vmatpush.msra.mxu0 0.0
    %107 = vmatpush.msra.mxu0 0.0
    %108 = vmatpush.msra.mxu0 0.0
    %109 = vmatpush.msra.mxu0 %v24
    %110 = vmatpush.msra.mxu0 %v23
    %111 = vmatpush.msra.mxu0 %v22
    %112 = vmatpush.msra.mxu0 %v21
    %113 = vmatmul.f32.gmra.mxu0 %v95
    %v114 = vpop.f32.mrf.mxu0
    %v115 = vadd.f32 %v93, %v114
    %116 = vdwg.mxu0
    %vm117 = vcmask 64512
    %118 = vst.msk [vmem:[#allocation2] sm:$0xff] %vm117, %v115
    // Predicated region
    $region18: #{tpu_custom_call.1} parent=1 // pred_check
      _
    $region19: #{tpu_custom_call.1} parent=1 // pred_check_branch
      %120 = sbr.rel (0) target = $region21
    $region20: #{tpu_custom_call.1} parent=1 // pred_region
      %122 = vsyncadd [#allocation3], 0
      %s124 = sshll.u32 [#allocation2], 4
      %s125 = int_to_ptr.vmem [resolvable:$true] %s124
      %s126 = sshll.u32 %s4, 4
      %s127 = int_to_ptr.hbm [resolvable:$true] %s126
      %129 = dma.vmem_to_hbm [thread:$0]  %s125, 128, %s127, [#allocation3]
    $region21: #{tpu_custom_call.1} parent=1 // pred_fallthru
      _
    // Predicated region
    $region22: #{tpu_custom_call.1} parent=1 // pred_check
      _
    $region23: #{tpu_custom_call.1} parent=1 // pred_check_branch
      %131 = sbr.rel (0) target = $region25
    $region24: #{tpu_custom_call.1} parent=1 // pred_region
      %133 = dma.done [#allocation3], 128
    $region25: #{tpu_custom_call.1} parent=1 // pred_fallthru
      _
    %134 = vsyncpa [#allocation3], 1

</llo_original>
